<compile_context>
chip_gen: v5e
topology: v5e:2x2
jax: 0.10.0
libtpu: 0.0.40
codegen_flags: <defaults>
</compile_context>

<pallas_src>
import functools

import jax
import jax.numpy as jnp
import numpy as np
from jax import lax
from jax.experimental import pallas as pl
from jax.experimental.pallas import tpu as pltpu


# ----------------------------------------------------------------------------
# Fused kernel: per grid step, Nb batch images (packed along sublanes) go through
# dw3x3->BN->ReLU6->pw1x1->BN->ReLU6, dw3x3->BN->ReLU6->pw1x1->BN, + residual.
# Layout: (Nb*channels, flat_spatial) with flat index = row*Wp + col.
# ----------------------------------------------------------------------------
def _mobilev1_residual_kernel(x_ref, dwp1_ref, pwp1_ref, dwp2_ref, pwp2_ref,
                              mask_ref, out_ref, padbuf_ref, *,
                              nb, cin, cmid, cout, slabw, res_off, woff,
                              scratch_lanes, taps1, taps2, use_mxu):
    f32 = jnp.float32
    rows_in, rows_mid = nb * cin, nb * cmid

    dwp1 = dwp1_ref[...]                      # (rows_in, 10): 9 folded dw taps + bias
    dwp2 = dwp2_ref[...]                      # (rows_mid, 10)
    pwp1 = pwp1_ref[...]                      # (rows_mid, rows_in+1): block-diag pw^T + bias col
    pwp2 = pwp2_ref[...]                      # (rows_out, rows_mid+1)
    mask = mask_ref[...]                      # (1, slabw): 1.0 on valid output columns

    def pointwise(y, pwp, rows_y, gy, gz):
        """Folded 1x1 conv + BN bias.  MXU for realistic channel counts (free slot while
        the VALU binds); per-batch-group VPU broadcast-FMA for tiny C (demo path)."""
        w_bd = pwp[:, :rows_y]
        bias = pwp[:, rows_y:rows_y + 1]
        if use_mxu:
            # Block-diagonal weights -> one matmul covers all packed batch groups.
            return jnp.dot(w_bd, y, preferred_element_type=f32) + bias
        w_small = w_bd[:gz, :gy]              # identical diagonal block for every group
        zs = []
        for g in range(nb):
            yg = y[g * gy:(g + 1) * gy, :]
            zg = jnp.zeros((gz, slabw), f32) + bias[g * gz:(g + 1) * gz]
            for ci in range(gy):
                zg = zg + w_small[:, ci:ci + 1] * yg[ci:ci + 1, :]
            zs.append(zg)
        return zs[0] if nb == 1 else jnp.concatenate(zs, axis=0)

    # ---- stage 1: depthwise 3x3 (BN folded, bias-initialised acc) -> ReLU6 --------------
    # Tap windows are read directly from the input ref (no full-slab value + reslicing).
    acc = jnp.zeros((rows_in, slabw), f32) + dwp1[:, 9:10]
    for t, off in enumerate(taps1):
        acc = acc + dwp1[:, t:t + 1] * x_ref[0, :, off:off + slabw].astype(f32)
    y1 = jnp.clip(acc, 0.0, 6.0)

    # ---- stage 1: pointwise 1x1 -> BN -> ReLU6 ------------------------------------------
    z1 = jnp.clip(pointwise(y1, pwp1, rows_in, cin, cmid), 0.0, 6.0)

    # ---- re-embed stage-1 output as stage-2's zero-padded flat input (VMEM scratch) -----
    # Only the two small border regions outside [woff, woff+slabw) ever need explicit
    # zeros; interior pad columns are re-zeroed by the masked write each step.  Zeroed
    # per-step (cheap) rather than under program_id==0 so the scratch stays valid when
    # the "parallel" batch axis is split across TensorCores (megacore).
    padbuf_ref[:, 0:woff] = jnp.zeros((rows_mid, woff), f32)
    padbuf_ref[:, woff + slabw:scratch_lanes] = jnp.zeros(
        (rows_mid, scratch_lanes - woff - slabw), f32)
    padbuf_ref[:, woff:woff + slabw] = z1 * mask

    # ---- stage 2: depthwise 3x3 -> ReLU6 -------------------------------------------------
    acc2 = jnp.zeros((rows_mid, slabw), f32) + dwp2[:, 9:10]
    for t, off in enumerate(taps2):
        acc2 = acc2 + dwp2[:, t:t + 1] * padbuf_ref[:, off:off + slabw]
    y2 = jnp.clip(acc2, 0.0, 6.0)

    # ---- stage 2: pointwise 1x1 -> BN (no 2nd ReLU6), residual straight from x_ref ------
    z2 = pointwise(y2, pwp2, rows_mid, cmid, cout)
    z2 = z2 + x_ref[0, :, res_off:res_off + slabw].astype(f32)
    out_ref[0] = z2.astype(out_ref.dtype)


# ----------------------------------------------------------------------------
# Wrapper: NCHW in -> NCHW out.  One pallas_call for the whole residual block.
# ----------------------------------------------------------------------------
def mobilev1_residual(x, params, *, stride, pad, dilation):
    N, Cin, H, W = x.shape
    p1, p2 = params["conv1"], params["conv2"]
    Cmid = p1["pw_w"].shape[1]
    Cout = p2["pw_w"].shape[1]
    d = dilation
    e = dilation if dilation > 1 else pad        # PyTorch: padding = dilation if dilation>1 else pad

    # Only the downsample=None configuration is implemented (residual == x).
    if not (stride == 1 and Cout == Cin and e == d):
        # TODO(synk): implement the downsample (conv+bn shortcut) / stride>1 path.
        raise NotImplementedError(
            "fused kernel implements the downsample=None path: stride=1, planes==inplanes, "
            "'same' spatial padding (padding == dilation)")

    Hp, Wp = H + 2 * e, W + 2 * e
    slab = (H - 1) * Wp + W                      # flat length of valid conv outputs (row stride Wp)
    base = e * Wp + e                            # flat offset of output (0,0) inside a padded image
    slabw = -(-(H * Wp) // 128) * 128            # lane-dense compute/store width (>= H*Wp >= slab)
    max_tap = 2 * d * (Wp + 1)
    padlen = -(-max(Hp * Wp, max_tap + slabw) // 128) * 128
    woff = -(-base // 128) * 128                 # lane-aligned write offset inside the scratch
    shift = woff - base
    scratch_lanes = -(-(shift + max_tap + slabw) // 128) * 128

    taps1 = tuple(ki * d * Wp + kj * d for ki in range(3) for kj in range(3))
    taps2 = tuple(shift + o for o in taps1)

    # Batch packing factor: fill all 8 f32 sublanes of every vreg at tiny channel counts.
    Nb = max(1, 8 // Cin) if Cin <= 8 else 1
    while Nb > 1 and N % Nb:
        Nb -= 1
    G = N // Nb
    rows_in, rows_mid, rows_out = Nb * Cin, Nb * Cmid, Nb * Cout
    use_mxu = min(Cin, Cmid) >= 16               # per review: MXU pointwise only at realistic C

    # ---- input layout plumbing (XLA side): spatial zero-pad, flatten, lane-align, pack ----
    # TODO(synk): build the padded flat image inside the kernel from raw NCHW rows to save
    #             one HBM pass over x for the mem-bound large-H,W case.
    xp = jnp.pad(x, ((0, 0), (0, 0), (e, e), (e, e))).reshape(N, Cin, Hp * Wp)
    xp = jnp.pad(xp, ((0, 0), (0, 0), (0, padlen - Hp * Wp)))
    xpack = xp.reshape(G, rows_in, padlen)       # batch-outer / channel-inner sublane packing

    # ---- fold BN (inference) into the conv weights; tile / block-diag for the packing ----
    def fold_stage(p):
        cin_s = p["dw_w"].shape[-1]
        dw = p["dw_w"].reshape(9, cin_s).T * p["dw_scale"][:, None]       # (cin, 9)
        dwp = jnp.concatenate([dw, p["dw_bias"][:, None]], axis=1)        # (cin, 10)
        pwt = (p["pw_w"] * p["pw_scale"][None, :]).T                      # (cout, cin)
        return (dwp.astype(jnp.float32), pwt.astype(jnp.float32),
                p["pw_bias"].astype(jnp.float32))

    dwp1, pw1t, pw1b = fold_stage(p1)
    dwp2, pw2t, pw2b = fold_stage(p2)
    eye = jnp.eye(Nb, dtype=jnp.float32)

    def pack_stage(dwp, pwt, pwb):
        dwp_p = jnp.tile(dwp, (Nb, 1))                                    # (Nb*cin, 10)
        pwp_p = jnp.concatenate([jnp.kron(eye, pwt),                      # (Nb*cout, Nb*cin)
                                 jnp.tile(pwb, Nb)[:, None]], axis=1)     # + bias column
        return dwp_p, pwp_p

    dwp1p, pwp1p = pack_stage(dwp1, pw1t, pw1b)
    dwp2p, pwp2p = pack_stage(dwp2, pw2t, pw2b)

    # Valid-output-column mask in flat (row stride Wp) coordinates (host constant).
    j = np.arange(slabw)
    mask = jnp.asarray(((j < slab) & ((j % Wp) < W)).astype(np.float32)[None, :])

    kernel = functools.partial(
        _mobilev1_residual_kernel,
        nb=Nb, cin=Cin, cmid=Cmid, cout=Cout, slabw=slabw, res_off=base,
        woff=woff, scratch_lanes=scratch_lanes, taps1=taps1, taps2=taps2,
        use_mxu=use_mxu)

    out_pack = pl.pallas_call(
        kernel,
        out_shape=jax.ShapeDtypeStruct((G, rows_out, slabw), x.dtype),
        grid=(G,),
        in_specs=[
            pl.BlockSpec((1, rows_in, padlen), lambda g: (g, 0, 0)),
            # Small constant operands: constant index_map keeps them resident across steps.
            pl.BlockSpec((rows_in, 10), lambda g: (0, 0)),
            pl.BlockSpec((rows_mid, rows_in + 1), lambda g: (0, 0)),
            pl.BlockSpec((rows_mid, 10), lambda g: (0, 0)),
            pl.BlockSpec((rows_out, rows_mid + 1), lambda g: (0, 0)),
            pl.BlockSpec((1, slabw), lambda g: (0, 0)),
        ],
        out_specs=pl.BlockSpec((1, rows_out, slabw), lambda g: (g, 0, 0)),
        scratch_shapes=[pltpu.VMEM((rows_mid, scratch_lanes), jnp.float32)],
        # TODO(synk): add a row-tile grid axis (also marked "parallel") before scaling
        #             H, W, C so per-step VMEM stays bounded on v7x (64 MiB per TC).
        compiler_params=pltpu.CompilerParams(
            dimension_semantics=("parallel",),
            vmem_limit_bytes=32 * 1024 * 1024),
    )(xpack, dwp1p, pwp1p, dwp2p, pwp2p, mask)

    # ---- unpack: slice-only epilogue (no pad pass), back to NCHW --------------------------
    out = out_pack.reshape(N, Cout, slabw)[:, :, :H * Wp]
    out = out.reshape(N, Cout, H, Wp)[:, :, :, :W]
    return out


# ----------------------------------------------------------------------------
# Pure-JAX reference (for correctness check)
# ----------------------------------------------------------------------------
def _dws_block_ref(x, dw_w, dw_scale, dw_bias, pw_w, pw_scale, pw_bias,
                   *, stride, pad, dilation, second_relu, residual=None):
    C = x.shape[-1]
    epad = dilation if dilation > 1 else pad
    dw = dw_w.reshape(3, 3, 1, C)                 # HWIO depthwise
    y = lax.conv_general_dilated(
        x, dw, window_strides=(stride, stride),
        padding=[(epad, epad), (epad, epad)],
        rhs_dilation=(dilation, dilation),
        dimension_numbers=("NHWC", "HWIO", "NHWC"),
        feature_group_count=C,
        precision=lax.Precision.HIGHEST,
    )
    y = y * dw_scale + dw_bias
    y = jnp.clip(y, 0.0, 6.0)
    z = jnp.einsum("nhwc,cd->nhwd", y, pw_w, precision=lax.Precision.HIGHEST)
    z = z * pw_scale + pw_bias
    if second_relu:
        z = jnp.clip(z, 0.0, 6.0)
    if residual is not None:
        z = z + residual
    return z


def mobilev1_residual_ref(x_nchw, params, *, stride, pad, dilation):
    x = jnp.transpose(x_nchw, (0, 2, 3, 1))
    p1, p2 = params["conv1"], params["conv2"]
    out = _dws_block_ref(x, p1["dw_w"], p1["dw_scale"], p1["dw_bias"],
                         p1["pw_w"], p1["pw_scale"], p1["pw_bias"],
                         stride=stride, pad=pad, dilation=dilation,
                         second_relu=True)
    out = _dws_block_ref(out, p2["dw_w"], p2["dw_scale"], p2["dw_bias"],
                         p2["pw_w"], p2["pw_scale"], p2["pw_bias"],
                         stride=1, pad=pad, dilation=dilation,
                         second_relu=False, residual=x)
    return jnp.transpose(out, (0, 3, 1, 2))


# ----------------------------------------------------------------------------
# Deterministic parameter construction (BN in inference mode -> per-channel affine)
# ----------------------------------------------------------------------------
def make_params(key, inplanes, planes):
    ks = jax.random.split(key, 8)

    def bn_affine(k, c):
        k1, k2 = jax.random.split(k)
        gamma = 1.0 + 0.1 * jax.random.normal(k1, (c,), jnp.float32)
        beta = 0.05 * jax.random.normal(k2, (c,), jnp.float32)
        mean = jnp.zeros((c,), jnp.float32)
        var = jnp.ones((c,), jnp.float32)
        eps = 1e-5
        scale = gamma / jnp.sqrt(var + eps)
        bias = beta - mean * scale
        return scale, bias

    def block(kw_dw, kw_pw, kb1, kb2, cin, cout):
        dw_w = 0.2 * jax.random.normal(kw_dw, (3, 3, cin), jnp.float32)
        pw_w = 0.2 * jax.random.normal(kw_pw, (cin, cout), jnp.float32)
        dw_scale, dw_bias = bn_affine(kb1, cin)
        pw_scale, pw_bias = bn_affine(kb2, cout)
        return dict(dw_w=dw_w, dw_scale=dw_scale, dw_bias=dw_bias,
                    pw_w=pw_w, pw_scale=pw_scale, pw_bias=pw_bias)

    return {
        "conv1": block(ks[0], ks[1], ks[2], ks[3], inplanes, planes),
        "conv2": block(ks[4], ks[5], ks[6], ks[7], planes, planes),
    }


if __name__ == "__main__":
    # MobileV1_Residual(inplanes=4, planes=4, stride=1, downsample=None, pad=1, dilation=1)
    inplanes, planes = 4, 4
    stride, pad, dilation = 1, 1, 1

    key = jax.random.PRNGKey(0)
    kx, kp = jax.random.split(key)
    x = jax.random.normal(kx, (2, inplanes, 16, 16), jnp.float32)   # NCHW
    params = make_params(kp, inplanes, planes)

    fwd = jax.jit(functools.partial(mobilev1_residual,
                                    stride=stride, pad=pad, dilation=dilation))
    out = jax.block_until_ready(fwd(x, params))

    ref = jax.block_until_ready(
        mobilev1_residual_ref(x, params, stride=stride, pad=pad, dilation=dilation))

    np.testing.assert_allclose(np.asarray(out), np.asarray(ref),
                               rtol=1e-3, atol=1e-3)
    print("KERNEL_OK")
</pallas_src>

<mosaic_0001>
module attributes {stable_mosaic.version = 11 : i64} {
  func.func @_mobilev1_residual_kernel(%arg0: i32, %arg1: memref<1x8x512xf32, #tpu.memory_space<vmem>>, %arg2: memref<8x10xf32, #tpu.memory_space<vmem>>, %arg3: memref<8x9xf32, #tpu.memory_space<vmem>>, %arg4: memref<8x10xf32, #tpu.memory_space<vmem>>, %arg5: memref<8x9xf32, #tpu.memory_space<vmem>>, %arg6: memref<1x384xf32, #tpu.memory_space<vmem>>, %arg7: memref<1x8x384xf32, #tpu.memory_space<vmem>>, %arg8: memref<8x640xf32, #tpu.memory_space<vmem>>) attributes {dimension_semantics = [#tpu.dimension_semantics<parallel>], iteration_bounds = array<i64: 1>, scalar_prefetch = 0 : i64, scratch_operands = 1 : i64, tpu.core_type = #tpu.core_type<tc>, window_params = [{transform_indices = @transform_0, window_bounds = array<i64: 1, 8, 512>}, {pipeline_mode = #tpu.pipeline_mode<synchronous>, transform_indices = @transform_1, window_bounds = array<i64: 8, 10>}, {pipeline_mode = #tpu.pipeline_mode<synchronous>, transform_indices = @transform_2, window_bounds = array<i64: 8, 9>}, {pipeline_mode = #tpu.pipeline_mode<synchronous>, transform_indices = @transform_3, window_bounds = array<i64: 8, 10>}, {pipeline_mode = #tpu.pipeline_mode<synchronous>, transform_indices = @transform_4, window_bounds = array<i64: 8, 9>}, {pipeline_mode = #tpu.pipeline_mode<synchronous>, transform_indices = @transform_5, window_bounds = array<i64: 1, 384>}, {transform_indices = @transform_6, window_bounds = array<i64: 1, 8, 384>}]} {
    %c0 = arith.constant 0 : index
    %c0_0 = arith.constant 0 : index
    %0 = vector.load %arg2[%c0, %c0_0] : memref<8x10xf32, #tpu.memory_space<vmem>>, vector<8x10xf32>
    %c0_1 = arith.constant 0 : index
    %c0_2 = arith.constant 0 : index
    %1 = vector.load %arg4[%c0_1, %c0_2] : memref<8x10xf32, #tpu.memory_space<vmem>>, vector<8x10xf32>
    %c0_3 = arith.constant 0 : index
    %c0_4 = arith.constant 0 : index
    %2 = vector.load %arg3[%c0_3, %c0_4] : memref<8x9xf32, #tpu.memory_space<vmem>>, vector<8x9xf32>
    %c0_5 = arith.constant 0 : index
    %c0_6 = arith.constant 0 : index
    %3 = vector.load %arg5[%c0_5, %c0_6] : memref<8x9xf32, #tpu.memory_space<vmem>>, vector<8x9xf32>
    %c0_7 = arith.constant 0 : index
    %c0_8 = arith.constant 0 : index
    %4 = vector.load %arg6[%c0_7, %c0_8] : memref<1x384xf32, #tpu.memory_space<vmem>>, vector<1x384xf32>
    %cst = arith.constant 0.000000e+00 : f32
    %5 = vector.broadcast %cst : f32 to vector<8x384xf32>
    %6 = vector.extract_strided_slice %0 {offsets = [0, 9], sizes = [8, 1], strides = [1, 1]} : vector<8x10xf32> to vector<8x1xf32>
    %7 = vector.broadcast %6 : vector<8x1xf32> to vector<8x384xf32>
    %8 = arith.addf %5, %7 : vector<8x384xf32>
    %9 = vector.extract_strided_slice %0 {offsets = [0, 0], sizes = [8, 1], strides = [1, 1]} : vector<8x10xf32> to vector<8x1xf32>
    %c0_9 = arith.constant 0 : index
    %c0_10 = arith.constant 0 : index
    %c0_11 = arith.constant 0 : index
    %10 = vector.load %arg1[%c0_9, %c0_10, %c0_11] : memref<1x8x512xf32, #tpu.memory_space<vmem>>, vector<1x8x384xf32>
    %11 = vector.shape_cast %10 : vector<1x8x384xf32> to vector<8x384xf32>
    %12 = vector.broadcast %9 : vector<8x1xf32> to vector<8x384xf32>
    %13 = arith.mulf %12, %11 : vector<8x384xf32>
    %14 = arith.addf %8, %13 : vector<8x384xf32>
    %15 = vector.extract_strided_slice %0 {offsets = [0, 1], sizes = [8, 1], strides = [1, 1]} : vector<8x10xf32> to vector<8x1xf32>
    %c0_12 = arith.constant 0 : index
    %c0_13 = arith.constant 0 : index
    %c1 = arith.constant 1 : index
    %16 = vector.load %arg1[%c0_12, %c0_13, %c1] : memref<1x8x512xf32, #tpu.memory_space<vmem>>, vector<1x8x384xf32>
    %17 = vector.shape_cast %16 : vector<1x8x384xf32> to vector<8x384xf32>
    %18 = vector.broadcast %15 : vector<8x1xf32> to vector<8x384xf32>
    %19 = arith.mulf %18, %17 : vector<8x384xf32>
    %20 = arith.addf %14, %19 : vector<8x384xf32>
    %21 = vector.extract_strided_slice %0 {offsets = [0, 2], sizes = [8, 1], strides = [1, 1]} : vector<8x10xf32> to vector<8x1xf32>
    %c0_14 = arith.constant 0 : index
    %c0_15 = arith.constant 0 : index
    %c2 = arith.constant 2 : index
    %22 = vector.load %arg1[%c0_14, %c0_15, %c2] : memref<1x8x512xf32, #tpu.memory_space<vmem>>, vector<1x8x384xf32>
    %23 = vector.shape_cast %22 : vector<1x8x384xf32> to vector<8x384xf32>
    %24 = vector.broadcast %21 : vector<8x1xf32> to vector<8x384xf32>
    %25 = arith.mulf %24, %23 : vector<8x384xf32>
    %26 = arith.addf %20, %25 : vector<8x384xf32>
    %27 = vector.extract_strided_slice %0 {offsets = [0, 3], sizes = [8, 1], strides = [1, 1]} : vector<8x10xf32> to vector<8x1xf32>
    %c0_16 = arith.constant 0 : index
    %c0_17 = arith.constant 0 : index
    %c18 = arith.constant 18 : index
    %28 = vector.load %arg1[%c0_16, %c0_17, %c18] : memref<1x8x512xf32, #tpu.memory_space<vmem>>, vector<1x8x384xf32>
    %29 = vector.shape_cast %28 : vector<1x8x384xf32> to vector<8x384xf32>
    %30 = vector.broadcast %27 : vector<8x1xf32> to vector<8x384xf32>
    %31 = arith.mulf %30, %29 : vector<8x384xf32>
    %32 = arith.addf %26, %31 : vector<8x384xf32>
    %33 = vector.extract_strided_slice %0 {offsets = [0, 4], sizes = [8, 1], strides = [1, 1]} : vector<8x10xf32> to vector<8x1xf32>
    %c0_18 = arith.constant 0 : index
    %c0_19 = arith.constant 0 : index
    %c19 = arith.constant 19 : index
    %34 = vector.load %arg1[%c0_18, %c0_19, %c19] : memref<1x8x512xf32, #tpu.memory_space<vmem>>, vector<1x8x384xf32>
    %35 = vector.shape_cast %34 : vector<1x8x384xf32> to vector<8x384xf32>
    %36 = vector.broadcast %33 : vector<8x1xf32> to vector<8x384xf32>
    %37 = arith.mulf %36, %35 : vector<8x384xf32>
    %38 = arith.addf %32, %37 : vector<8x384xf32>
    %39 = vector.extract_strided_slice %0 {offsets = [0, 5], sizes = [8, 1], strides = [1, 1]} : vector<8x10xf32> to vector<8x1xf32>
    %c0_20 = arith.constant 0 : index
    %c0_21 = arith.constant 0 : index
    %c20 = arith.constant 20 : index
    %40 = vector.load %arg1[%c0_20, %c0_21, %c20] : memref<1x8x512xf32, #tpu.memory_space<vmem>>, vector<1x8x384xf32>
    %41 = vector.shape_cast %40 : vector<1x8x384xf32> to vector<8x384xf32>
    %42 = vector.broadcast %39 : vector<8x1xf32> to vector<8x384xf32>
    %43 = arith.mulf %42, %41 : vector<8x384xf32>
    %44 = arith.addf %38, %43 : vector<8x384xf32>
    %45 = vector.extract_strided_slice %0 {offsets = [0, 6], sizes = [8, 1], strides = [1, 1]} : vector<8x10xf32> to vector<8x1xf32>
    %c0_22 = arith.constant 0 : index
    %c0_23 = arith.constant 0 : index
    %c36 = arith.constant 36 : index
    %46 = vector.load %arg1[%c0_22, %c0_23, %c36] : memref<1x8x512xf32, #tpu.memory_space<vmem>>, vector<1x8x384xf32>
    %47 = vector.shape_cast %46 : vector<1x8x384xf32> to vector<8x384xf32>
    %48 = vector.broadcast %45 : vector<8x1xf32> to vector<8x384xf32>
    %49 = arith.mulf %48, %47 : vector<8x384xf32>
    %50 = arith.addf %44, %49 : vector<8x384xf32>
    %51 = vector.extract_strided_slice %0 {offsets = [0, 7], sizes = [8, 1], strides = [1, 1]} : vector<8x10xf32> to vector<8x1xf32>
    %c0_24 = arith.constant 0 : index
    %c0_25 = arith.constant 0 : index
    %c37 = arith.constant 37 : index
    %52 = vector.load %arg1[%c0_24, %c0_25, %c37] : memref<1x8x512xf32, #tpu.memory_space<vmem>>, vector<1x8x384xf32>
    %53 = vector.shape_cast %52 : vector<1x8x384xf32> to vector<8x384xf32>
    %54 = vector.broadcast %51 : vector<8x1xf32> to vector<8x384xf32>
    %55 = arith.mulf %54, %53 : vector<8x384xf32>
    %56 = arith.addf %50, %55 : vector<8x384xf32>
    %57 = vector.extract_strided_slice %0 {offsets = [0, 8], sizes = [8, 1], strides = [1, 1]} : vector<8x10xf32> to vector<8x1xf32>
    %c0_26 = arith.constant 0 : index
    %c0_27 = arith.constant 0 : index
    %c38 = arith.constant 38 : index
    %58 = vector.load %arg1[%c0_26, %c0_27, %c38] : memref<1x8x512xf32, #tpu.memory_space<vmem>>, vector<1x8x384xf32>
    %59 = vector.shape_cast %58 : vector<1x8x384xf32> to vector<8x384xf32>
    %60 = vector.broadcast %57 : vector<8x1xf32> to vector<8x384xf32>
    %61 = arith.mulf %60, %59 : vector<8x384xf32>
    %62 = arith.addf %56, %61 : vector<8x384xf32>
    %cst_28 = arith.constant 0.000000e+00 : f32
    %cst_29 = arith.constant 6.000000e+00 : f32
    %63 = vector.broadcast %cst_28 : f32 to vector<8x384xf32>
    %64 = arith.maximumf %63, %62 : vector<8x384xf32>
    %65 = vector.broadcast %cst_29 : f32 to vector<8x384xf32>
    %66 = arith.minimumf %65, %64 : vector<8x384xf32>
    %67 = vector.extract_strided_slice %2 {offsets = [0, 0], sizes = [8, 8], strides = [1, 1]} : vector<8x9xf32> to vector<8x8xf32>
    %68 = vector.extract_strided_slice %2 {offsets = [0, 8], sizes = [8, 1], strides = [1, 1]} : vector<8x9xf32> to vector<8x1xf32>
    %69 = vector.extract_strided_slice %67 {offsets = [0, 0], sizes = [4, 4], strides = [1, 1]} : vector<8x8xf32> to vector<4x4xf32>
    %70 = vector.extract_strided_slice %66 {offsets = [0, 0], sizes = [4, 384], strides = [1, 1]} : vector<8x384xf32> to vector<4x384xf32>
    %cst_30 = arith.constant 0.000000e+00 : f32
    %71 = vector.broadcast %cst_30 : f32 to vector<4x384xf32>
    %72 = vector.extract_strided_slice %68 {offsets = [0, 0], sizes = [4, 1], strides = [1, 1]} : vector<8x1xf32> to vector<4x1xf32>
    %73 = vector.broadcast %72 : vector<4x1xf32> to vector<4x384xf32>
    %74 = arith.addf %71, %73 : vector<4x384xf32>
    %75 = vector.extract_strided_slice %69 {offsets = [0, 0], sizes = [4, 1], strides = [1, 1]} : vector<4x4xf32> to vector<4x1xf32>
    %76 = vector.extract_strided_slice %70 {offsets = [0, 0], sizes = [1, 384], strides = [1, 1]} : vector<4x384xf32> to vector<1x384xf32>
    %77 = vector.broadcast %75 : vector<4x1xf32> to vector<4x384xf32>
    %78 = vector.broadcast %76 : vector<1x384xf32> to vector<4x384xf32>
    %79 = arith.mulf %77, %78 : vector<4x384xf32>
    %80 = arith.addf %74, %79 : vector<4x384xf32>
    %81 = vector.extract_strided_slice %69 {offsets = [0, 1], sizes = [4, 1], strides = [1, 1]} : vector<4x4xf32> to vector<4x1xf32>
    %82 = vector.extract_strided_slice %70 {offsets = [1, 0], sizes = [1, 384], strides = [1, 1]} : vector<4x384xf32> to vector<1x384xf32>
    %83 = vector.broadcast %81 : vector<4x1xf32> to vector<4x384xf32>
    %84 = vector.broadcast %82 : vector<1x384xf32> to vector<4x384xf32>
    %85 = arith.mulf %83, %84 : vector<4x384xf32>
    %86 = arith.addf %80, %85 : vector<4x384xf32>
    %87 = vector.extract_strided_slice %69 {offsets = [0, 2], sizes = [4, 1], strides = [1, 1]} : vector<4x4xf32> to vector<4x1xf32>
    %88 = vector.extract_strided_slice %70 {offsets = [2, 0], sizes = [1, 384], strides = [1, 1]} : vector<4x384xf32> to vector<1x384xf32>
    %89 = vector.broadcast %87 : vector<4x1xf32> to vector<4x384xf32>
    %90 = vector.broadcast %88 : vector<1x384xf32> to vector<4x384xf32>
    %91 = arith.mulf %89, %90 : vector<4x384xf32>
    %92 = arith.addf %86, %91 : vector<4x384xf32>
    %93 = vector.extract_strided_slice %69 {offsets = [0, 3], sizes = [4, 1], strides = [1, 1]} : vector<4x4xf32> to vector<4x1xf32>
    %94 = vector.extract_strided_slice %70 {offsets = [3, 0], sizes = [1, 384], strides = [1, 1]} : vector<4x384xf32> to vector<1x384xf32>
    %95 = vector.broadcast %93 : vector<4x1xf32> to vector<4x384xf32>
    %96 = vector.broadcast %94 : vector<1x384xf32> to vector<4x384xf32>
    %97 = arith.mulf %95, %96 : vector<4x384xf32>
    %98 = arith.addf %92, %97 : vector<4x384xf32>
    %99 = vector.extract_strided_slice %66 {offsets = [4, 0], sizes = [4, 384], strides = [1, 1]} : vector<8x384xf32> to vector<4x384xf32>
    %cst_31 = arith.constant 0.000000e+00 : f32
    %100 = vector.broadcast %cst_31 : f32 to vector<4x384xf32>
    %101 = vector.extract_strided_slice %68 {offsets = [4, 0], sizes = [4, 1], strides = [1, 1]} : vector<8x1xf32> to vector<4x1xf32>
    %102 = vector.broadcast %101 : vector<4x1xf32> to vector<4x384xf32>
    %103 = arith.addf %100, %102 : vector<4x384xf32>
    %104 = vector.extract_strided_slice %69 {offsets = [0, 0], sizes = [4, 1], strides = [1, 1]} : vector<4x4xf32> to vector<4x1xf32>
    %105 = vector.extract_strided_slice %99 {offsets = [0, 0], sizes = [1, 384], strides = [1, 1]} : vector<4x384xf32> to vector<1x384xf32>
    %106 = vector.broadcast %104 : vector<4x1xf32> to vector<4x384xf32>
    %107 = vector.broadcast %105 : vector<1x384xf32> to vector<4x384xf32>
    %108 = arith.mulf %106, %107 : vector<4x384xf32>
    %109 = arith.addf %103, %108 : vector<4x384xf32>
    %110 = vector.extract_strided_slice %69 {offsets = [0, 1], sizes = [4, 1], strides = [1, 1]} : vector<4x4xf32> to vector<4x1xf32>
    %111 = vector.extract_strided_slice %99 {offsets = [1, 0], sizes = [1, 384], strides = [1, 1]} : vector<4x384xf32> to vector<1x384xf32>
    %112 = vector.broadcast %110 : vector<4x1xf32> to vector<4x384xf32>
    %113 = vector.broadcast %111 : vector<1x384xf32> to vector<4x384xf32>
    %114 = arith.mulf %112, %113 : vector<4x384xf32>
    %115 = arith.addf %109, %114 : vector<4x384xf32>
    %116 = vector.extract_strided_slice %69 {offsets = [0, 2], sizes = [4, 1], strides = [1, 1]} : vector<4x4xf32> to vector<4x1xf32>
    %117 = vector.extract_strided_slice %99 {offsets = [2, 0], sizes = [1, 384], strides = [1, 1]} : vector<4x384xf32> to vector<1x384xf32>
    %118 = vector.broadcast %116 : vector<4x1xf32> to vector<4x384xf32>
    %119 = vector.broadcast %117 : vector<1x384xf32> to vector<4x384xf32>
    %120 = arith.mulf %118, %119 : vector<4x384xf32>
    %121 = arith.addf %115, %120 : vector<4x384xf32>
    %122 = vector.extract_strided_slice %69 {offsets = [0, 3], sizes = [4, 1], strides = [1, 1]} : vector<4x4xf32> to vector<4x1xf32>
    %123 = vector.extract_strided_slice %99 {offsets = [3, 0], sizes = [1, 384], strides = [1, 1]} : vector<4x384xf32> to vector<1x384xf32>
    %124 = vector.broadcast %122 : vector<4x1xf32> to vector<4x384xf32>
    %125 = vector.broadcast %123 : vector<1x384xf32> to vector<4x384xf32>
    %126 = arith.mulf %124, %125 : vector<4x384xf32>
    %127 = arith.addf %121, %126 : vector<4x384xf32>
    %128 = tpu.concatenate %98, %127 in 0 : vector<4x384xf32>, vector<4x384xf32> -> vector<8x384xf32>
    %cst_32 = arith.constant 0.000000e+00 : f32
    %cst_33 = arith.constant 6.000000e+00 : f32
    %129 = vector.broadcast %cst_32 : f32 to vector<8x384xf32>
    %130 = arith.maximumf %129, %128 : vector<8x384xf32>
    %131 = vector.broadcast %cst_33 : f32 to vector<8x384xf32>
    %132 = arith.minimumf %131, %130 : vector<8x384xf32>
    %cst_34 = arith.constant 0.000000e+00 : f32
    %133 = vector.broadcast %cst_34 : f32 to vector<8x128xf32>
    %c0_35 = arith.constant 0 : index
    %c0_36 = arith.constant 0 : index
    %134 = vector.load %arg8[%c0_35, %c0_36] : memref<8x640xf32, #tpu.memory_space<vmem>>, vector<8x128xf32>
    tpu.vector_store %arg8[%c0_35, %c0_36], %133 {strides = array<i32>} : memref<8x640xf32, #tpu.memory_space<vmem>>, vector<8x128xf32>,
    %cst_37 = arith.constant 0.000000e+00 : f32
    %135 = vector.broadcast %cst_37 : f32 to vector<8x128xf32>
    %c0_38 = arith.constant 0 : index
    %c512 = arith.constant 512 : index
    %136 = vector.load %arg8[%c0_38, %c512] : memref<8x640xf32, #tpu.memory_space<vmem>>, vector<8x128xf32>
    tpu.vector_store %arg8[%c0_38, %c512], %135 {strides = array<i32>} : memref<8x640xf32, #tpu.memory_space<vmem>>, vector<8x128xf32>,
    %137 = vector.broadcast %4 : vector<1x384xf32> to vector<8x384xf32>
    %138 = arith.mulf %132, %137 : vector<8x384xf32>
    %c0_39 = arith.constant 0 : index
    %c128 = arith.constant 128 : index
    %139 = vector.load %arg8[%c0_39, %c128] : memref<8x640xf32, #tpu.memory_space<vmem>>, vector<8x384xf32>
    tpu.vector_store %arg8[%c0_39, %c128], %138 {strides = array<i32>} : memref<8x640xf32, #tpu.memory_space<vmem>>, vector<8x384xf32>,
    %cst_40 = arith.constant 0.000000e+00 : f32
    %140 = vector.broadcast %cst_40 : f32 to vector<8x384xf32>
    %141 = vector.extract_strided_slice %1 {offsets = [0, 9], sizes = [8, 1], strides = [1, 1]} : vector<8x10xf32> to vector<8x1xf32>
    %142 = vector.broadcast %141 : vector<8x1xf32> to vector<8x384xf32>
    %143 = arith.addf %140, %142 : vector<8x384xf32>
    %144 = vector.extract_strided_slice %1 {offsets = [0, 0], sizes = [8, 1], strides = [1, 1]} : vector<8x10xf32> to vector<8x1xf32>
    %c0_41 = arith.constant 0 : index
    %c109 = arith.constant 109 : index
    %145 = vector.load %arg8[%c0_41, %c109] : memref<8x640xf32, #tpu.memory_space<vmem>>, vector<8x384xf32>
    %146 = vector.broadcast %144 : vector<8x1xf32> to vector<8x384xf32>
    %147 = arith.mulf %146, %145 : vector<8x384xf32>
    %148 = arith.addf %143, %147 : vector<8x384xf32>
    %149 = vector.extract_strided_slice %1 {offsets = [0, 1], sizes = [8, 1], strides = [1, 1]} : vector<8x10xf32> to vector<8x1xf32>
    %c0_42 = arith.constant 0 : index
    %c110 = arith.constant 110 : index
    %150 = vector.load %arg8[%c0_42, %c110] : memref<8x640xf32, #tpu.memory_space<vmem>>, vector<8x384xf32>
    %151 = vector.broadcast %149 : vector<8x1xf32> to vector<8x384xf32>
    %152 = arith.mulf %151, %150 : vector<8x384xf32>
    %153 = arith.addf %148, %152 : vector<8x384xf32>
    %154 = vector.extract_strided_slice %1 {offsets = [0, 2], sizes = [8, 1], strides = [1, 1]} : vector<8x10xf32> to vector<8x1xf32>
    %c0_43 = arith.constant 0 : index
    %c111 = arith.constant 111 : index
    %155 = vector.load %arg8[%c0_43, %c111] : memref<8x640xf32, #tpu.memory_space<vmem>>, vector<8x384xf32>
    %156 = vector.broadcast %154 : vector<8x1xf32> to vector<8x384xf32>
    %157 = arith.mulf %156, %155 : vector<8x384xf32>
    %158 = arith.addf %153, %157 : vector<8x384xf32>
    %159 = vector.extract_strided_slice %1 {offsets = [0, 3], sizes = [8, 1], strides = [1, 1]} : vector<8x10xf32> to vector<8x1xf32>
    %c0_44 = arith.constant 0 : index
    %c127 = arith.constant 127 : index
    %160 = vector.load %arg8[%c0_44, %c127] : memref<8x640xf32, #tpu.memory_space<vmem>>, vector<8x384xf32>
    %161 = vector.broadcast %159 : vector<8x1xf32> to vector<8x384xf32>
    %162 = arith.mulf %161, %160 : vector<8x384xf32>
    %163 = arith.addf %158, %162 : vector<8x384xf32>
    %164 = vector.extract_strided_slice %1 {offsets = [0, 4], sizes = [8, 1], strides = [1, 1]} : vector<8x10xf32> to vector<8x1xf32>
    %c0_45 = arith.constant 0 : index
    %c128_46 = arith.constant 128 : index
    %165 = vector.load %arg8[%c0_45, %c128_46] : memref<8x640xf32, #tpu.memory_space<vmem>>, vector<8x384xf32>
    %166 = vector.broadcast %164 : vector<8x1xf32> to vector<8x384xf32>
    %167 = arith.mulf %166, %165 : vector<8x384xf32>
    %168 = arith.addf %163, %167 : vector<8x384xf32>
    %169 = vector.extract_strided_slice %1 {offsets = [0, 5], sizes = [8, 1], strides = [1, 1]} : vector<8x10xf32> to vector<8x1xf32>
    %c0_47 = arith.constant 0 : index
    %c129 = arith.constant 129 : index
    %170 = vector.load %arg8[%c0_47, %c129] : memref<8x640xf32, #tpu.memory_space<vmem>>, vector<8x384xf32>
    %171 = vector.broadcast %169 : vector<8x1xf32> to vector<8x384xf32>
    %172 = arith.mulf %171, %170 : vector<8x384xf32>
    %173 = arith.addf %168, %172 : vector<8x384xf32>
    %174 = vector.extract_strided_slice %1 {offsets = [0, 6], sizes = [8, 1], strides = [1, 1]} : vector<8x10xf32> to vector<8x1xf32>
    %c0_48 = arith.constant 0 : index
    %c145 = arith.constant 145 : index
    %175 = vector.load %arg8[%c0_48, %c145] : memref<8x640xf32, #tpu.memory_space<vmem>>, vector<8x384xf32>
    %176 = vector.broadcast %174 : vector<8x1xf32> to vector<8x384xf32>
    %177 = arith.mulf %176, %175 : vector<8x384xf32>
    %178 = arith.addf %173, %177 : vector<8x384xf32>
    %179 = vector.extract_strided_slice %1 {offsets = [0, 7], sizes = [8, 1], strides = [1, 1]} : vector<8x10xf32> to vector<8x1xf32>
    %c0_49 = arith.constant 0 : index
    %c146 = arith.constant 146 : index
    %180 = vector.load %arg8[%c0_49, %c146] : memref<8x640xf32, #tpu.memory_space<vmem>>, vector<8x384xf32>
    %181 = vector.broadcast %179 : vector<8x1xf32> to vector<8x384xf32>
    %182 = arith.mulf %181, %180 : vector<8x384xf32>
    %183 = arith.addf %178, %182 : vector<8x384xf32>
    %184 = vector.extract_strided_slice %1 {offsets = [0, 8], sizes = [8, 1], strides = [1, 1]} : vector<8x10xf32> to vector<8x1xf32>
    %c0_50 = arith.constant 0 : index
    %c147 = arith.constant 147 : index
    %185 = vector.load %arg8[%c0_50, %c147] : memref<8x640xf32, #tpu.memory_space<vmem>>, vector<8x384xf32>
    %186 = vector.broadcast %184 : vector<8x1xf32> to vector<8x384xf32>
    %187 = arith.mulf %186, %185 : vector<8x384xf32>
    %188 = arith.addf %183, %187 : vector<8x384xf32>
    %cst_51 = arith.constant 0.000000e+00 : f32
    %cst_52 = arith.constant 6.000000e+00 : f32
    %189 = vector.broadcast %cst_51 : f32 to vector<8x384xf32>
    %190 = arith.maximumf %189, %188 : vector<8x384xf32>
    %191 = vector.broadcast %cst_52 : f32 to vector<8x384xf32>
    %192 = arith.minimumf %191, %190 : vector<8x384xf32>
    %193 = vector.extract_strided_slice %3 {offsets = [0, 0], sizes = [8, 8], strides = [1, 1]} : vector<8x9xf32> to vector<8x8xf32>
    %194 = vector.extract_strided_slice %3 {offsets = [0, 8], sizes = [8, 1], strides = [1, 1]} : vector<8x9xf32> to vector<8x1xf32>
    %195 = vector.extract_strided_slice %193 {offsets = [0, 0], sizes = [4, 4], strides = [1, 1]} : vector<8x8xf32> to vector<4x4xf32>
    %196 = vector.extract_strided_slice %192 {offsets = [0, 0], sizes = [4, 384], strides = [1, 1]} : vector<8x384xf32> to vector<4x384xf32>
    %cst_53 = arith.constant 0.000000e+00 : f32
    %197 = vector.broadcast %cst_53 : f32 to vector<4x384xf32>
    %198 = vector.extract_strided_slice %194 {offsets = [0, 0], sizes = [4, 1], strides = [1, 1]} : vector<8x1xf32> to vector<4x1xf32>
    %199 = vector.broadcast %198 : vector<4x1xf32> to vector<4x384xf32>
    %200 = arith.addf %197, %199 : vector<4x384xf32>
    %201 = vector.extract_strided_slice %195 {offsets = [0, 0], sizes = [4, 1], strides = [1, 1]} : vector<4x4xf32> to vector<4x1xf32>
    %202 = vector.extract_strided_slice %196 {offsets = [0, 0], sizes = [1, 384], strides = [1, 1]} : vector<4x384xf32> to vector<1x384xf32>
    %203 = vector.broadcast %201 : vector<4x1xf32> to vector<4x384xf32>
    %204 = vector.broadcast %202 : vector<1x384xf32> to vector<4x384xf32>
    %205 = arith.mulf %203, %204 : vector<4x384xf32>
    %206 = arith.addf %200, %205 : vector<4x384xf32>
    %207 = vector.extract_strided_slice %195 {offsets = [0, 1], sizes = [4, 1], strides = [1, 1]} : vector<4x4xf32> to vector<4x1xf32>
    %208 = vector.extract_strided_slice %196 {offsets = [1, 0], sizes = [1, 384], strides = [1, 1]} : vector<4x384xf32> to vector<1x384xf32>
    %209 = vector.broadcast %207 : vector<4x1xf32> to vector<4x384xf32>
    %210 = vector.broadcast %208 : vector<1x384xf32> to vector<4x384xf32>
    %211 = arith.mulf %209, %210 : vector<4x384xf32>
    %212 = arith.addf %206, %211 : vector<4x384xf32>
    %213 = vector.extract_strided_slice %195 {offsets = [0, 2], sizes = [4, 1], strides = [1, 1]} : vector<4x4xf32> to vector<4x1xf32>
    %214 = vector.extract_strided_slice %196 {offsets = [2, 0], sizes = [1, 384], strides = [1, 1]} : vector<4x384xf32> to vector<1x384xf32>
    %215 = vector.broadcast %213 : vector<4x1xf32> to vector<4x384xf32>
    %216 = vector.broadcast %214 : vector<1x384xf32> to vector<4x384xf32>
    %217 = arith.mulf %215, %216 : vector<4x384xf32>
    %218 = arith.addf %212, %217 : vector<4x384xf32>
    %219 = vector.extract_strided_slice %195 {offsets = [0, 3], sizes = [4, 1], strides = [1, 1]} : vector<4x4xf32> to vector<4x1xf32>
    %220 = vector.extract_strided_slice %196 {offsets = [3, 0], sizes = [1, 384], strides = [1, 1]} : vector<4x384xf32> to vector<1x384xf32>
    %221 = vector.broadcast %219 : vector<4x1xf32> to vector<4x384xf32>
    %222 = vector.broadcast %220 : vector<1x384xf32> to vector<4x384xf32>
    %223 = arith.mulf %221, %222 : vector<4x384xf32>
    %224 = arith.addf %218, %223 : vector<4x384xf32>
    %225 = vector.extract_strided_slice %192 {offsets = [4, 0], sizes = [4, 384], strides = [1, 1]} : vector<8x384xf32> to vector<4x384xf32>
    %cst_54 = arith.constant 0.000000e+00 : f32
    %226 = vector.broadcast %cst_54 : f32 to vector<4x384xf32>
    %227 = vector.extract_strided_slice %194 {offsets = [4, 0], sizes = [4, 1], strides = [1, 1]} : vector<8x1xf32> to vector<4x1xf32>
    %228 = vector.broadcast %227 : vector<4x1xf32> to vector<4x384xf32>
    %229 = arith.addf %226, %228 : vector<4x384xf32>
    %230 = vector.extract_strided_slice %195 {offsets = [0, 0], sizes = [4, 1], strides = [1, 1]} : vector<4x4xf32> to vector<4x1xf32>
    %231 = vector.extract_strided_slice %225 {offsets = [0, 0], sizes = [1, 384], strides = [1, 1]} : vector<4x384xf32> to vector<1x384xf32>
    %232 = vector.broadcast %230 : vector<4x1xf32> to vector<4x384xf32>
    %233 = vector.broadcast %231 : vector<1x384xf32> to vector<4x384xf32>
    %234 = arith.mulf %232, %233 : vector<4x384xf32>
    %235 = arith.addf %229, %234 : vector<4x384xf32>
    %236 = vector.extract_strided_slice %195 {offsets = [0, 1], sizes = [4, 1], strides = [1, 1]} : vector<4x4xf32> to vector<4x1xf32>
    %237 = vector.extract_strided_slice %225 {offsets = [1, 0], sizes = [1, 384], strides = [1, 1]} : vector<4x384xf32> to vector<1x384xf32>
    %238 = vector.broadcast %236 : vector<4x1xf32> to vector<4x384xf32>
    %239 = vector.broadcast %237 : vector<1x384xf32> to vector<4x384xf32>
    %240 = arith.mulf %238, %239 : vector<4x384xf32>
    %241 = arith.addf %235, %240 : vector<4x384xf32>
    %242 = vector.extract_strided_slice %195 {offsets = [0, 2], sizes = [4, 1], strides = [1, 1]} : vector<4x4xf32> to vector<4x1xf32>
    %243 = vector.extract_strided_slice %225 {offsets = [2, 0], sizes = [1, 384], strides = [1, 1]} : vector<4x384xf32> to vector<1x384xf32>
    %244 = vector.broadcast %242 : vector<4x1xf32> to vector<4x384xf32>
    %245 = vector.broadcast %243 : vector<1x384xf32> to vector<4x384xf32>
    %246 = arith.mulf %244, %245 : vector<4x384xf32>
    %247 = arith.addf %241, %246 : vector<4x384xf32>
    %248 = vector.extract_strided_slice %195 {offsets = [0, 3], sizes = [4, 1], strides = [1, 1]} : vector<4x4xf32> to vector<4x1xf32>
    %249 = vector.extract_strided_slice %225 {offsets = [3, 0], sizes = [1, 384], strides = [1, 1]} : vector<4x384xf32> to vector<1x384xf32>
    %250 = vector.broadcast %248 : vector<4x1xf32> to vector<4x384xf32>
    %251 = vector.broadcast %249 : vector<1x384xf32> to vector<4x384xf32>
    %252 = arith.mulf %250, %251 : vector<4x384xf32>
    %253 = arith.addf %247, %252 : vector<4x384xf32>
    %254 = tpu.concatenate %224, %253 in 0 : vector<4x384xf32>, vector<4x384xf32> -> vector<8x384xf32>
    %c0_55 = arith.constant 0 : index
    %c0_56 = arith.constant 0 : index
    %c19_57 = arith.constant 19 : index
    %255 = vector.load %arg1[%c0_55, %c0_56, %c19_57] : memref<1x8x512xf32, #tpu.memory_space<vmem>>, vector<1x8x384xf32>
    %256 = vector.shape_cast %255 : vector<1x8x384xf32> to vector<8x384xf32>
    %257 = arith.addf %254, %256 : vector<8x384xf32>
    %c0_58 = arith.constant 0 : index
    %c0_59 = arith.constant 0 : index
    %c0_60 = arith.constant 0 : index
    %258 = vector.load %arg7[%c0_58, %c0_59, %c0_60] : memref<1x8x384xf32, #tpu.memory_space<vmem>>, vector<1x8x384xf32>
    %259 = vector.shape_cast %258 : vector<1x8x384xf32> to vector<8x384xf32>
    %260 = vector.shape_cast %257 : vector<8x384xf32> to vector<1x8x384xf32>
    tpu.vector_store %arg7[%c0_58, %c0_59, %c0_60], %260 {strides = array<i32>} : memref<1x8x384xf32, #tpu.memory_space<vmem>>, vector<1x8x384xf32>,
    return
  }
  func.func @transform_0(%arg0: i32) -> (i32, i32, i32) {
    %c0_i32 = arith.constant 0 : i32
    %c0_i32_0 = arith.constant 0 : i32
    %c0_i32_1 = arith.constant 0 : i32
    return %arg0, %c0_i32, %c0_i32_0 : i32, i32, i32
  }
  func.func @transform_1(%arg0: i32) -> (i32, i32) {
    %c0_i32 = arith.constant 0 : i32
    %c0_i32_0 = arith.constant 0 : i32
    %c0_i32_1 = arith.constant 0 : i32
    return %c0_i32, %c0_i32_0 : i32, i32
  }
  func.func @transform_2(%arg0: i32) -> (i32, i32) {
    %c0_i32 = arith.constant 0 : i32
    %c0_i32_0 = arith.constant 0 : i32
    %c0_i32_1 = arith.constant 0 : i32
    return %c0_i32, %c0_i32_0 : i32, i32
  }
  func.func @transform_3(%arg0: i32) -> (i32, i32) {
    %c0_i32 = arith.constant 0 : i32
    %c0_i32_0 = arith.constant 0 : i32
    %c0_i32_1 = arith.constant 0 : i32
    return %c0_i32, %c0_i32_0 : i32, i32
  }
  func.func @transform_4(%arg0: i32) -> (i32, i32) {
    %c0_i32 = arith.constant 0 : i32
    %c0_i32_0 = arith.constant 0 : i32
    %c0_i32_1 = arith.constant 0 : i32
    return %c0_i32, %c0_i32_0 : i32, i32
  }
  func.func @transform_5(%arg0: i32) -> (i32, i32) {
    %c0_i32 = arith.constant 0 : i32
    %c0_i32_0 = arith.constant 0 : i32
    %c0_i32_1 = arith.constant 0 : i32
    return %c0_i32, %c0_i32_0 : i32, i32
  }
  func.func @transform_6(%arg0: i32) -> (i32, i32, i32) {
    %c0_i32 = arith.constant 0 : i32
    %c0_i32_0 = arith.constant 0 : i32
    %c0_i32_1 = arith.constant 0 : i32
    return %arg0, %c0_i32, %c0_i32_0 : i32, i32, i32
  }
}

</mosaic_0001>

<llo_original>
// kernel: tile.28
$region0: #{tile.28}
  #allocation0 [shape = 's32[1]{0}', space=sflag, size = 0x4, scoped, tag = 'scoped memory for tile.28']
  %s0 = inlined_call_operand.vmem [shape: f32[4], index: 0, kind: input, shape index: {}]
  %s1 = inlined_call_operand.vmem [shape: f32[2,4], index: 1, kind: output, shape index: {}]
  // Predicated region
  $region2: #{tile.28} parent=0 // pred_check
    _
  $region3: #{tile.28} parent=0 // pred_check_branch
    %3 = sbr.rel (0) target = $region5
  $region4: #{tile.28} parent=0 // pred_region
    _
  $region5: #{tile.28} parent=0 // pred_fallthru
    _
  %v4 = vld [vmem:[%s0] ss:$0 sm:$0xff]
  %5 = vst [vmem:[%s1] sm:$0x3] %v4

// kernel: tile.0
$region0: #{tile.0}
  %s0 = inlined_call_operand.vmem [shape: f32[2,4], index: 0, kind: input, shape index: {}]
  %s1 = inlined_call_operand.vmem [shape: f32[8,1], index: 1, kind: output, shape index: {}]
  $region1: #{tile.0} parent=0
    #allocation0 [shape = 'u8[4096]{0}', space=vmem, size = 0x1000, scoped, tag = 'scoped mem for input reshape']
    %s3 = ssub.s32 4, 1
    %v4 = vld [vmem:[%s0] sm:%s3]
    %5 = vst [vmem:[#allocation0] sm:%s3] %v4
    %v6 = vld [vmem:[#allocation0] sm:$0x3]
    %vm7 = vcmask 7168
    %8 = vst.msk [vmem:[%s1] ss:$4 sm:$0x3] %vm7, %v6
    %v9 = vld [vmem:[#allocation0] sm:$0x3]
    %10 = vrot.lane.b32.xlu0 %v9, 127
    %v11 = vpop.permute.xlu0 %10
    %vm12 = vcmask 7168
    %s13 = scalar_lea.vmem %s1, 1
    %14 = vst.msk [vmem:[%s13] ss:$4 sm:$0x3] %vm12, %v11
    %v15 = vld [vmem:[#allocation0] sm:$0x3]
    %16 = vrot.lane.b32.xlu0 %v15, 126
    %v17 = vpop.permute.xlu0 %16
    %vm18 = vcmask 7168
    %s19 = scalar_lea.vmem %s1, 2
    %20 = vst.msk [vmem:[%s19] ss:$4 sm:$0x3] %vm18, %v17
    %v21 = vld [vmem:[#allocation0] sm:$0x3]
    %22 = vrot.lane.b32.xlu0 %v21, 125
    %v23 = vpop.permute.xlu0 %22
    %vm24 = vcmask 7168
    %s25 = scalar_lea.vmem %s1, 3
    %26 = vst.msk [vmem:[%s25] ss:$4 sm:$0x3] %vm24, %v23

// kernel: mobilev1_residual.1
$region0: #{mobilev1_residual.1}
  #allocation0 [shape = 'u32[]', space=smem, size = 0x4, offset = 0x4, fixed_abs, tag = 'smem constant byte address 0x4 - core index']
  #allocation1 [shape = 'u32[72,128]{1,0:T(1,128)}', space=vmem, size = 0x9000, scoped, tag = 'internal scratch']
  #allocation2 [shape = 'f32[8,640]{1,0:T(8,128)}', space=vmem, size = 0x5000, scoped, tag = 'scratch operand']
  %s0 = inlined_call_operand.vmem [shape: f32[1,8,512], index: 0, kind: input, shape index: {}]
  %s1 = inlined_call_operand.vmem [shape: f32[8,10], index: 1, kind: input, shape index: {}]
  %s2 = inlined_call_operand.vmem [shape: f32[8,9], index: 2, kind: input, shape index: {}]
  %s3 = inlined_call_operand.vmem [shape: f32[8,10], index: 3, kind: input, shape index: {}]
  %s4 = inlined_call_operand.vmem [shape: f32[8,9], index: 4, kind: input, shape index: {}]
  %s5 = inlined_call_operand.vmem [shape: f32[1,384], index: 5, kind: input, shape index: {}]
  %s6 = inlined_call_operand.vmem [shape: f32[1,8,384], index: 6, kind: output, shape index: {}]
  %s7 = sld [smem:[#allocation0]]
  $region34: #{mobilev1_residual.1} parent=0
    _
  %s9 = ssub.s32 1, %s7
  %s10 = scalar_select 0, %s9, %s7
  // Predicated region
  $region2: #{mobilev1_residual.1} parent=0 // pred_check
    _
  $region3: #{mobilev1_residual.1} parent=0 // pred_check_branch
    %12 = sbr.rel (0) target = $region5
  $region4: #{mobilev1_residual.1} parent=0 // pred_region
    _
  $region5: #{mobilev1_residual.1} parent=0 // pred_fallthru
    _
  // Predicated region
  $region6: #{mobilev1_residual.1} parent=0 // pred_check
    _
  $region7: #{mobilev1_residual.1} parent=0 // pred_check_branch
    %14 = sbr.rel (0) target = $region9
  $region8: #{mobilev1_residual.1} parent=0 // pred_region
    _
  $region9: #{mobilev1_residual.1} parent=0 // pred_fallthru
    _
  // Predicated region
  $region10: #{mobilev1_residual.1} parent=0 // pred_check
    _
  $region11: #{mobilev1_residual.1} parent=0 // pred_check_branch
    %16 = sbr.rel (0) target = $region13
  $region12: #{mobilev1_residual.1} parent=0 // pred_region
    _
  $region13: #{mobilev1_residual.1} parent=0 // pred_fallthru
    _
  // Predicated region
  $region14: #{mobilev1_residual.1} parent=0 // pred_check
    _
  $region15: #{mobilev1_residual.1} parent=0 // pred_check_branch
    %18 = sbr.rel (0) target = $region17
  $region16: #{mobilev1_residual.1} parent=0 // pred_region
    _
  $region17: #{mobilev1_residual.1} parent=0 // pred_fallthru
    _
  // Predicated region
  $region18: #{mobilev1_residual.1} parent=0 // pred_check
    _
  $region19: #{mobilev1_residual.1} parent=0 // pred_check_branch
    %20 = sbr.rel (0) target = $region21
  $region20: #{mobilev1_residual.1} parent=0 // pred_region
    _
  $region21: #{mobilev1_residual.1} parent=0 // pred_fallthru
    _
  // Predicated region
  $region22: #{mobilev1_residual.1} parent=0 // pred_check
    _
  $region23: #{mobilev1_residual.1} parent=0 // pred_check_branch
    %22 = sbr.rel (0) target = $region25
  $region24: #{mobilev1_residual.1} parent=0 // pred_region
    _
  $region25: #{mobilev1_residual.1} parent=0 // pred_fallthru
    _
  %v23 = vld [vmem:[%s1] sm:$0xff]
  %v24 = vld [vmem:[%s3] sm:$0xff]
  %v25 = vld [vmem:[%s2] sm:$0xff]
  %v26 = vld [vmem:[%s4] sm:$0xff]
  %v27 = vld [vmem:[%s5] sm:$0x7]
  %29 = vset.pattern.permute.xlu0 9
  %30 = vperm.xlu0 %29, %v23
  %v31 = vpop.permute.xlu0 %30
  %v33 = vadd.f32 %v31, 0.0
  %v34 = vld [vmem:[%s0] sm:$0xff]
  %v35 = vld [vmem:[%s0 + $0x8] sm:$0xff]
  %v36 = vld [vmem:[%s0 + $0x10] sm:$0xff]
  %37 = vset.pattern.permute.xlu0 0
  %38 = vperm.xlu0 %37, %v23
  %v39 = vpop.permute.xlu0 %38
  %v41 = vmul.f32 %v39, %v34
  %v42 = vmul.f32 %v39, %v35
  %v43 = vmul.f32 %v39, %v36
  %v44 = vadd.f32 %v33, %v41
  %v45 = vadd.f32 %v33, %v42
  %v46 = vadd.f32 %v33, %v43
  %v47 = vld [vmem:[%s0] sm:$0xff]
  %v48 = vld [vmem:[%s0 + $0x8] sm:$0xff]
  %v49 = vld [vmem:[%s0 + $0x10] sm:$0xff]
  %v50 = vld [vmem:[%s0 + $0x18] sm:$0xff]
  %51 = vset.pattern.permute.xlu0 1
  %52 = vperm.xlu0 %51, %v23
  %v53 = vpop.permute.xlu0 %52
  %v55 = vmul.f32 %v53, %v47
  %v56 = vmul.f32 %v53, %v48
  %v57 = vmul.f32 %v53, %v49
  %v58 = vmul.f32 %v53, %v50
  %63 = vrot.lane.b32.xlu0 %v55, 127
  %v64 = vpop.permute.xlu0 %63
  %65 = vrot.lane.b32.xlu0 %v56, 127
  %v66 = vpop.permute.xlu0 %65
  %67 = vrot.lane.b32.xlu0 %v57, 127
  %v68 = vpop.permute.xlu0 %67
  %69 = vrot.lane.b32.xlu0 %v58, 127
  %v70 = vpop.permute.xlu0 %69
  %vm71 = vcmask 1039360
  %v72 = vsel %vm71, %v64, %v66
  %v73 = vsel %vm71, %v66, %v68
  %v74 = vsel %vm71, %v68, %v70
  %v78 = vadd.f32 %v44, %v72
  %v79 = vadd.f32 %v45, %v73
  %v80 = vadd.f32 %v46, %v74
  %81 = vset.pattern.permute.xlu0 2
  %82 = vperm.xlu0 %81, %v23
  %v83 = vpop.permute.xlu0 %82
  %v85 = vmul.f32 %v83, %v47
  %v86 = vmul.f32 %v83, %v48
  %v87 = vmul.f32 %v83, %v49
  %v88 = vmul.f32 %v83, %v50
  %93 = vrot.lane.b32.xlu0 %v85, 126
  %v94 = vpop.permute.xlu0 %93
  %95 = vrot.lane.b32.xlu0 %v86, 126
  %v96 = vpop.permute.xlu0 %95
  %97 = vrot.lane.b32.xlu0 %v87, 126
  %v98 = vpop.permute.xlu0 %97
  %99 = vrot.lane.b32.xlu0 %v88, 126
  %v100 = vpop.permute.xlu0 %99
  %vm101 = vcmask 1031168
  %v102 = vsel %vm101, %v94, %v96
  %v103 = vsel %vm101, %v96, %v98
  %v104 = vsel %vm101, %v98, %v100
  %v108 = vadd.f32 %v78, %v102
  %v109 = vadd.f32 %v79, %v103
  %v110 = vadd.f32 %v80, %v104
  %111 = vset.pattern.permute.xlu0 3
  %112 = vperm.xlu0 %111, %v23
  %v113 = vpop.permute.xlu0 %112
  %v115 = vmul.f32 %v113, %v47
  %v116 = vmul.f32 %v113, %v48
  %v117 = vmul.f32 %v113, %v49
  %v118 = vmul.f32 %v113, %v50
  %123 = vrot.lane.b32.xlu0 %v115, 110
  %v124 = vpop.permute.xlu0 %123
  %125 = vrot.lane.b32.xlu0 %v116, 110
  %v126 = vpop.permute.xlu0 %125
  %127 = vrot.lane.b32.xlu0 %v117, 110
  %v128 = vpop.permute.xlu0 %127
  %129 = vrot.lane.b32.xlu0 %v118, 110
  %v130 = vpop.permute.xlu0 %129
  %vm131 = vcmask 900096
  %v132 = vsel %vm131, %v124, %v126
  %v133 = vsel %vm131, %v126, %v128
  %v134 = vsel %vm131, %v128, %v130
  %v138 = vadd.f32 %v108, %v132
  %v139 = vadd.f32 %v109, %v133
  %v140 = vadd.f32 %v110, %v134
  %141 = vset.pattern.permute.xlu0 4
  %142 = vperm.xlu0 %141, %v23
  %v143 = vpop.permute.xlu0 %142
  %v145 = vmul.f32 %v143, %v47
  %v146 = vmul.f32 %v143, %v48
  %v147 = vmul.f32 %v143, %v49
  %v148 = vmul.f32 %v143, %v50
  %153 = vrot.lane.b32.xlu0 %v145, 109
  %v154 = vpop.permute.xlu0 %153
  %155 = vrot.lane.b32.xlu0 %v146, 109
  %v156 = vpop.permute.xlu0 %155
  %157 = vrot.lane.b32.xlu0 %v147, 109
  %v158 = vpop.permute.xlu0 %157
  %159 = vrot.lane.b32.xlu0 %v148, 109
  %v160 = vpop.permute.xlu0 %159
  %vm161 = vcmask 891904
  %v162 = vsel %vm161, %v154, %v156
  %v163 = vsel %vm161, %v156, %v158
  %v164 = vsel %vm161, %v158, %v160
  %v168 = vadd.f32 %v138, %v162
  %v169 = vadd.f32 %v139, %v163
  %v170 = vadd.f32 %v140, %v164
  %171 = vset.pattern.permute.xlu0 5
  %172 = vperm.xlu0 %171, %v23
  %v173 = vpop.permute.xlu0 %172
  %v175 = vmul.f32 %v173, %v47
  %v176 = vmul.f32 %v173, %v48
  %v177 = vmul.f32 %v173, %v49
  %v178 = vmul.f32 %v173, %v50
  %183 = vrot.lane.b32.xlu0 %v175, 108
  %v184 = vpop.permute.xlu0 %183
  %185 = vrot.lane.b32.xlu0 %v176, 108
  %v186 = vpop.permute.xlu0 %185
  %187 = vrot.lane.b32.xlu0 %v177, 108
  %v188 = vpop.permute.xlu0 %187
  %189 = vrot.lane.b32.xlu0 %v178, 108
  %v190 = vpop.permute.xlu0 %189
  %vm191 = vcmask 883712
  %v192 = vsel %vm191, %v184, %v186
  %v193 = vsel %vm191, %v186, %v188
  %v194 = vsel %vm191, %v188, %v190
  %v198 = vadd.f32 %v168, %v192
  %v199 = vadd.f32 %v169, %v193
  %v200 = vadd.f32 %v170, %v194
  %201 = vset.pattern.permute.xlu0 6
  %202 = vperm.xlu0 %201, %v23
  %v203 = vpop.permute.xlu0 %202
  %v205 = vmul.f32 %v203, %v47
  %v206 = vmul.f32 %v203, %v48
  %v207 = vmul.f32 %v203, %v49
  %v208 = vmul.f32 %v203, %v50
  %213 = vrot.lane.b32.xlu0 %v205, 92
  %v214 = vpop.permute.xlu0 %213
  %215 = vrot.lane.b32.xlu0 %v206, 92
  %v216 = vpop.permute.xlu0 %215
  %217 = vrot.lane.b32.xlu0 %v207, 92
  %v218 = vpop.permute.xlu0 %217
  %219 = vrot.lane.b32.xlu0 %v208, 92
  %v220 = vpop.permute.xlu0 %219
  %vm221 = vcmask 752640
  %v222 = vsel %vm221, %v214, %v216
  %v223 = vsel %vm221, %v216, %v218
  %v224 = vsel %vm221, %v218, %v220
  %v228 = vadd.f32 %v198, %v222
  %v229 = vadd.f32 %v199, %v223
  %v230 = vadd.f32 %v200, %v224
  %231 = vset.pattern.permute.xlu0 7
  %232 = vperm.xlu0 %231, %v23
  %v233 = vpop.permute.xlu0 %232
  %v235 = vmul.f32 %v233, %v47
  %v236 = vmul.f32 %v233, %v48
  %v237 = vmul.f32 %v233, %v49
  %v238 = vmul.f32 %v233, %v50
  %243 = vrot.lane.b32.xlu0 %v235, 91
  %v244 = vpop.permute.xlu0 %243
  %245 = vrot.lane.b32.xlu0 %v236, 91
  %v246 = vpop.permute.xlu0 %245
  %247 = vrot.lane.b32.xlu0 %v237, 91
  %v248 = vpop.permute.xlu0 %247
  %249 = vrot.lane.b32.xlu0 %v238, 91
  %v250 = vpop.permute.xlu0 %249
  %vm251 = vcmask 744448
  %v252 = vsel %vm251, %v244, %v246
  %v253 = vsel %vm251, %v246, %v248
  %v254 = vsel %vm251, %v248, %v250
  %v258 = vadd.f32 %v228, %v252
  %v259 = vadd.f32 %v229, %v253
  %v260 = vadd.f32 %v230, %v254
  %261 = vset.pattern.permute.xlu0 8
  %262 = vperm.xlu0 %261, %v23
  %v263 = vpop.permute.xlu0 %262
  %v265 = vmul.f32 %v263, %v47
  %v266 = vmul.f32 %v263, %v48
  %v267 = vmul.f32 %v263, %v49
  %v268 = vmul.f32 %v263, %v50
  %273 = vrot.lane.b32.xlu0 %v265, 90
  %v274 = vpop.permute.xlu0 %273
  %275 = vrot.lane.b32.xlu0 %v266, 90
  %v276 = vpop.permute.xlu0 %275
  %277 = vrot.lane.b32.xlu0 %v267, 90
  %v278 = vpop.permute.xlu0 %277
  %279 = vrot.lane.b32.xlu0 %v268, 90
  %v280 = vpop.permute.xlu0 %279
  %vm281 = vcmask 736256
  %v282 = vsel %vm281, %v274, %v276
  %v283 = vsel %vm281, %v276, %v278
  %v284 = vsel %vm281, %v278, %v280
  %v288 = vadd.f32 %v258, %v282
  %v289 = vadd.f32 %v259, %v283
  %v290 = vadd.f32 %v260, %v284
  %v291 = vmax.f32 %v288, 0.0
  %v292 = vmax.f32 %v289, 0.0
  %v293 = vmax.f32 %v290, 0.0
  %v294 = vmin.f32 %v291, 6.0
  %v295 = vmin.f32 %v292, 6.0
  %v296 = vmin.f32 %v293, 6.0
  %298 = vset.pattern.permute.xlu0 8
  %299 = vperm.xlu0 %298, %v25
  %v300 = vpop.permute.xlu0 %299
  %v302 = vadd.f32 %v300, 0.0
  %303 = vset.pattern.permute.xlu0 0
  %304 = vperm.xlu0 %303, %v25
  %v305 = vpop.permute.xlu0 %304
  %v307 = vperm.slane %v294, 0
  %v308 = vperm.slane %v295, 0
  %v309 = vperm.slane %v296, 0
  %v310 = vmul.f32 %v305, %v307
  %v311 = vmul.f32 %v305, %v308
  %v312 = vmul.f32 %v305, %v309
  %v313 = vadd.f32 %v302, %v310
  %v314 = vadd.f32 %v302, %v311
  %v315 = vadd.f32 %v302, %v312
  %316 = vset.pattern.permute.xlu0 1
  %317 = vperm.xlu0 %316, %v25
  %v318 = vpop.permute.xlu0 %317
  %v320 = vperm.slane %v294, 1
  %v321 = vperm.slane %v295, 1
  %v322 = vperm.slane %v296, 1
  %v323 = vmul.f32 %v318, %v320
  %v324 = vmul.f32 %v318, %v321
  %v325 = vmul.f32 %v318, %v322
  %v326 = vadd.f32 %v313, %v323
  %v327 = vadd.f32 %v314, %v324
  %v328 = vadd.f32 %v315, %v325
  %329 = vset.pattern.permute.xlu0 2
  %330 = vperm.xlu0 %329, %v25
  %v331 = vpop.permute.xlu0 %330
  %v333 = vperm.slane %v294, 2
  %v334 = vperm.slane %v295, 2
  %v335 = vperm.slane %v296, 2
  %v336 = vmul.f32 %v331, %v333
  %v337 = vmul.f32 %v331, %v334
  %v338 = vmul.f32 %v331, %v335
  %v339 = vadd.f32 %v326, %v336
  %v340 = vadd.f32 %v327, %v337
  %v341 = vadd.f32 %v328, %v338
  %342 = vset.pattern.permute.xlu0 3
  %343 = vperm.xlu0 %342, %v25
  %v344 = vpop.permute.xlu0 %343
  %v346 = vperm.slane %v294, 3
  %v347 = vperm.slane %v295, 3
  %v348 = vperm.slane %v296, 3
  %v349 = vmul.f32 %v344, %v346
  %v350 = vmul.f32 %v344, %v347
  %v351 = vmul.f32 %v344, %v348
  %v352 = vadd.f32 %v339, %v349
  %v353 = vadd.f32 %v340, %v350
  %v354 = vadd.f32 %v341, %v351
  %v355 = vperm.slane %v294, 4
  %v356 = vperm.slane %v295, 4
  %v357 = vperm.slane %v296, 4
  %v358 = vmul.f32 %v305, %v355
  %v359 = vmul.f32 %v305, %v356
  %v360 = vmul.f32 %v305, %v357
  %v364 = vrot.slane %v358, 4
  %v365 = vrot.slane %v359, 4
  %v366 = vrot.slane %v360, 4
  %v370 = vadd.f32 %v302, %v364
  %v371 = vadd.f32 %v302, %v365
  %v372 = vadd.f32 %v302, %v366
  %v373 = vperm.slane %v294, 5
  %v374 = vperm.slane %v295, 5
  %v375 = vperm.slane %v296, 5
  %v376 = vmul.f32 %v318, %v373
  %v377 = vmul.f32 %v318, %v374
  %v378 = vmul.f32 %v318, %v375
  %v382 = vrot.slane %v376, 4
  %v383 = vrot.slane %v377, 4
  %v384 = vrot.slane %v378, 4
  %v388 = vadd.f32 %v370, %v382
  %v389 = vadd.f32 %v371, %v383
  %v390 = vadd.f32 %v372, %v384
  %v391 = vperm.slane %v294, 6
  %v392 = vperm.slane %v295, 6
  %v393 = vperm.slane %v296, 6
  %v394 = vmul.f32 %v331, %v391
  %v395 = vmul.f32 %v331, %v392
  %v396 = vmul.f32 %v331, %v393
  %v400 = vrot.slane %v394, 4
  %v401 = vrot.slane %v395, 4
  %v402 = vrot.slane %v396, 4
  %v406 = vadd.f32 %v388, %v400
  %v407 = vadd.f32 %v389, %v401
  %v408 = vadd.f32 %v390, %v402
  %v409 = vperm.slane %v294, 7
  %v410 = vperm.slane %v295, 7
  %v411 = vperm.slane %v296, 7
  %v412 = vmul.f32 %v344, %v409
  %v413 = vmul.f32 %v344, %v410
  %v414 = vmul.f32 %v344, %v411
  %v418 = vrot.slane %v412, 4
  %v419 = vrot.slane %v413, 4
  %v420 = vrot.slane %v414, 4
  %v424 = vadd.f32 %v406, %v418
  %v425 = vadd.f32 %v407, %v419
  %v426 = vadd.f32 %v408, %v420
  %vm427 = vcmask 1043456
  %v428 = vsel %vm427, %v352, %v424
  %v429 = vsel %vm427, %v353, %v425
  %v430 = vsel %vm427, %v354, %v426
  %v431 = vmax.f32 %v428, 0.0
  %v432 = vmax.f32 %v429, 0.0
  %v433 = vmax.f32 %v430, 0.0
  %v434 = vmin.f32 %v431, 6.0
  %v435 = vmin.f32 %v432, 6.0
  %v436 = vmin.f32 %v433, 6.0
  %437 = vst [vmem:[#allocation2] sm:$0xff] 0.0
  %438 = vst [vmem:[#allocation2 + $0x20] sm:$0xff] 0.0
  %v440 = vperm.slane %v27, 0
  %v441 = vperm.slane %v27, 1
  %v442 = vperm.slane %v27, 2
  %v446 = vmul.f32 %v434, %v440
  %v447 = vmul.f32 %v435, %v441
  %v448 = vmul.f32 %v436, %v442
  %449 = vst [vmem:[#allocation2 + $0x8] sm:$0xff] %v446
  %450 = vst [vmem:[#allocation2 + $0x10] sm:$0xff] %v447
  %451 = vst [vmem:[#allocation2 + $0x18] sm:$0xff] %v448
  %453 = vset.pattern.permute.xlu0 9
  %454 = vperm.xlu0 %453, %v24
  %v455 = vpop.permute.xlu0 %454
  %v457 = vadd.f32 %v455, 0.0
  %v458 = vld [vmem:[#allocation2] sm:$0xff]
  %v459 = vld [vmem:[#allocation2 + $0x8] sm:$0xff]
  %v460 = vld [vmem:[#allocation2 + $0x10] sm:$0xff]
  %v461 = vld [vmem:[#allocation2 + $0x18] sm:$0xff]
  %462 = vset.pattern.permute.xlu0 0
  %463 = vperm.xlu0 %462, %v24
  %v464 = vpop.permute.xlu0 %463
  %v466 = vmul.f32 %v464, %v458
  %v467 = vmul.f32 %v464, %v459
  %v468 = vmul.f32 %v464, %v460
  %v469 = vmul.f32 %v464, %v461
  %v470 = vadd.f32 %v457, %v466
  %v471 = vadd.f32 %v457, %v467
  %v472 = vadd.f32 %v457, %v468
  %v473 = vadd.f32 %v457, %v469
  %474 = vset.pattern.permute.xlu0 1
  %475 = vperm.xlu0 %474, %v24
  %v476 = vpop.permute.xlu0 %475
  %v478 = vmul.f32 %v476, %v458
  %v479 = vmul.f32 %v476, %v459
  %v480 = vmul.f32 %v476, %v460
  %v481 = vmul.f32 %v476, %v461
  %486 = vrot.lane.b32.xlu0 %v478, 127
  %v487 = vpop.permute.xlu0 %486
  %488 = vrot.lane.b32.xlu0 %v479, 127
  %v489 = vpop.permute.xlu0 %488
  %490 = vrot.lane.b32.xlu0 %v480, 127
  %v491 = vpop.permute.xlu0 %490
  %492 = vrot.lane.b32.xlu0 %v481, 127
  %v493 = vpop.permute.xlu0 %492
  %v494 = vsel %vm71, %v487, %v489
  %v495 = vsel %vm71, %v489, %v491
  %v496 = vsel %vm71, %v491, %v493
  %v501 = vadd.f32 %v470, %v494
  %v502 = vadd.f32 %v471, %v495
  %v503 = vadd.f32 %v472, %v496
  %v504 = vadd.f32 %v473, %v493
  %505 = vset.pattern.permute.xlu0 2
  %506 = vperm.xlu0 %505, %v24
  %v507 = vpop.permute.xlu0 %506
  %v509 = vmul.f32 %v507, %v458
  %v510 = vmul.f32 %v507, %v459
  %v511 = vmul.f32 %v507, %v460
  %v512 = vmul.f32 %v507, %v461
  %517 = vrot.lane.b32.xlu0 %v509, 126
  %v518 = vpop.permute.xlu0 %517
  %519 = vrot.lane.b32.xlu0 %v510, 126
  %v520 = vpop.permute.xlu0 %519
  %521 = vrot.lane.b32.xlu0 %v511, 126
  %v522 = vpop.permute.xlu0 %521
  %523 = vrot.lane.b32.xlu0 %v512, 126
  %v524 = vpop.permute.xlu0 %523
  %v525 = vsel %vm101, %v518, %v520
  %v526 = vsel %vm101, %v520, %v522
  %v527 = vsel %vm101, %v522, %v524
  %v532 = vadd.f32 %v501, %v525
  %v533 = vadd.f32 %v502, %v526
  %v534 = vadd.f32 %v503, %v527
  %v535 = vadd.f32 %v504, %v524
  %536 = vset.pattern.permute.xlu0 3
  %537 = vperm.xlu0 %536, %v24
  %v538 = vpop.permute.xlu0 %537
  %v540 = vmul.f32 %v538, %v458
  %v541 = vmul.f32 %v538, %v459
  %v542 = vmul.f32 %v538, %v460
  %v543 = vmul.f32 %v538, %v461
  %548 = vrot.lane.b32.xlu0 %v540, 110
  %v549 = vpop.permute.xlu0 %548
  %550 = vrot.lane.b32.xlu0 %v541, 110
  %v551 = vpop.permute.xlu0 %550
  %552 = vrot.lane.b32.xlu0 %v542, 110
  %v553 = vpop.permute.xlu0 %552
  %554 = vrot.lane.b32.xlu0 %v543, 110
  %v555 = vpop.permute.xlu0 %554
  %v556 = vsel %vm131, %v549, %v551
  %v557 = vsel %vm131, %v551, %v553
  %v558 = vsel %vm131, %v553, %v555
  %v563 = vadd.f32 %v532, %v556
  %v564 = vadd.f32 %v533, %v557
  %v565 = vadd.f32 %v534, %v558
  %v566 = vadd.f32 %v535, %v555
  %567 = vset.pattern.permute.xlu0 4
  %568 = vperm.xlu0 %567, %v24
  %v569 = vpop.permute.xlu0 %568
  %v571 = vmul.f32 %v569, %v459
  %v572 = vmul.f32 %v569, %v460
  %v573 = vmul.f32 %v569, %v461
  %577 = vrot.lane.b32.xlu0 %v571, 109
  %v578 = vpop.permute.xlu0 %577
  %579 = vrot.lane.b32.xlu0 %v572, 109
  %v580 = vpop.permute.xlu0 %579
  %581 = vrot.lane.b32.xlu0 %v573, 109
  %v582 = vpop.permute.xlu0 %581
  %v583 = vsel %vm161, %v578, %v580
  %v584 = vsel %vm161, %v580, %v582
  %v589 = vadd.f32 %v563, %v578
  %v590 = vadd.f32 %v564, %v583
  %v591 = vadd.f32 %v565, %v584
  %v592 = vadd.f32 %v566, %v582
  %v593 = vld [vmem:[#allocation2 + $0x8] sm:$0xff]
  %v594 = vld [vmem:[#allocation2 + $0x10] sm:$0xff]
  %v595 = vld [vmem:[#allocation2 + $0x18] sm:$0xff]
  %v596 = vld [vmem:[#allocation2 + $0x20] sm:$0xff]
  %597 = vset.pattern.permute.xlu0 5
  %598 = vperm.xlu0 %597, %v24
  %v599 = vpop.permute.xlu0 %598
  %v601 = vmul.f32 %v599, %v593
  %v602 = vmul.f32 %v599, %v594
  %v603 = vmul.f32 %v599, %v595
  %v604 = vmul.f32 %v599, %v596
  %609 = vrot.lane.b32.xlu0 %v601, 108
  %v610 = vpop.permute.xlu0 %609
  %611 = vrot.lane.b32.xlu0 %v602, 108
  %v612 = vpop.permute.xlu0 %611
  %613 = vrot.lane.b32.xlu0 %v603, 108
  %v614 = vpop.permute.xlu0 %613
  %615 = vrot.lane.b32.xlu0 %v604, 108
  %v616 = vpop.permute.xlu0 %615
  %v617 = vsel %vm191, %v610, %v612
  %v618 = vsel %vm191, %v612, %v614
  %v619 = vsel %vm191, %v614, %v616
  %v624 = vadd.f32 %v589, %v610
  %v625 = vadd.f32 %v590, %v617
  %v626 = vadd.f32 %v591, %v618
  %v627 = vadd.f32 %v592, %v619
  %628 = vset.pattern.permute.xlu0 6
  %629 = vperm.xlu0 %628, %v24
  %v630 = vpop.permute.xlu0 %629
  %v632 = vmul.f32 %v630, %v593
  %v633 = vmul.f32 %v630, %v594
  %v634 = vmul.f32 %v630, %v595
  %v635 = vmul.f32 %v630, %v596
  %640 = vrot.lane.b32.xlu0 %v632, 92
  %v641 = vpop.permute.xlu0 %640
  %642 = vrot.lane.b32.xlu0 %v633, 92
  %v643 = vpop.permute.xlu0 %642
  %644 = vrot.lane.b32.xlu0 %v634, 92
  %v645 = vpop.permute.xlu0 %644
  %646 = vrot.lane.b32.xlu0 %v635, 92
  %v647 = vpop.permute.xlu0 %646
  %v648 = vsel %vm221, %v641, %v643
  %v649 = vsel %vm221, %v643, %v645
  %v650 = vsel %vm221, %v645, %v647
  %v655 = vadd.f32 %v624, %v641
  %v656 = vadd.f32 %v625, %v648
  %v657 = vadd.f32 %v626, %v649
  %v658 = vadd.f32 %v627, %v650
  %659 = vset.pattern.permute.xlu0 7
  %660 = vperm.xlu0 %659, %v24
  %v661 = vpop.permute.xlu0 %660
  %v663 = vmul.f32 %v661, %v593
  %v664 = vmul.f32 %v661, %v594
  %v665 = vmul.f32 %v661, %v595
  %v666 = vmul.f32 %v661, %v596
  %671 = vrot.lane.b32.xlu0 %v663, 91
  %v672 = vpop.permute.xlu0 %671
  %673 = vrot.lane.b32.xlu0 %v664, 91
  %v674 = vpop.permute.xlu0 %673
  %675 = vrot.lane.b32.xlu0 %v665, 91
  %v676 = vpop.permute.xlu0 %675
  %677 = vrot.lane.b32.xlu0 %v666, 91
  %v678 = vpop.permute.xlu0 %677
  %v679 = vsel %vm251, %v672, %v674
  %v680 = vsel %vm251, %v674, %v676
  %v681 = vsel %vm251, %v676, %v678
  %v686 = vadd.f32 %v655, %v672
  %v687 = vadd.f32 %v656, %v679
  %v688 = vadd.f32 %v657, %v680
  %v689 = vadd.f32 %v658, %v681
  %690 = vset.pattern.permute.xlu0 8
  %691 = vperm.xlu0 %690, %v24
  %v692 = vpop.permute.xlu0 %691
  %v694 = vmul.f32 %v692, %v593
  %v695 = vmul.f32 %v692, %v594
  %v696 = vmul.f32 %v692, %v595
  %v697 = vmul.f32 %v692, %v596
  %702 = vrot.lane.b32.xlu0 %v694, 90
  %v703 = vpop.permute.xlu0 %702
  %704 = vrot.lane.b32.xlu0 %v695, 90
  %v705 = vpop.permute.xlu0 %704
  %706 = vrot.lane.b32.xlu0 %v696, 90
  %v707 = vpop.permute.xlu0 %706
  %708 = vrot.lane.b32.xlu0 %v697, 90
  %v709 = vpop.permute.xlu0 %708
  %v710 = vsel %vm281, %v703, %v705
  %v711 = vsel %vm281, %v705, %v707
  %v712 = vsel %vm281, %v707, %v709
  %v717 = vadd.f32 %v686, %v703
  %v718 = vadd.f32 %v687, %v710
  %v719 = vadd.f32 %v688, %v711
  %v720 = vadd.f32 %v689, %v712
  %v721 = vmax.f32 %v717, 0.0
  %v722 = vmax.f32 %v718, 0.0
  %v723 = vmax.f32 %v719, 0.0
  %v724 = vmax.f32 %v720, 0.0
  %v725 = vmin.f32 %v721, 6.0
  %v726 = vmin.f32 %v722, 6.0
  %v727 = vmin.f32 %v723, 6.0
  %v728 = vmin.f32 %v724, 6.0
  %730 = vset.pattern.permute.xlu0 8
  %731 = vperm.xlu0 %730, %v26
  %v732 = vpop.permute.xlu0 %731
  %v734 = vadd.f32 %v732, 0.0
  %735 = vset.pattern.permute.xlu0 0
  %736 = vperm.xlu0 %735, %v26
  %v737 = vpop.permute.xlu0 %736
  %v739 = vperm.slane %v725, 0
  %v740 = vperm.slane %v726, 0
  %v741 = vperm.slane %v727, 0
  %v742 = vperm.slane %v728, 0
  %v743 = vmul.f32 %v737, %v739
  %v744 = vmul.f32 %v737, %v740
  %v745 = vmul.f32 %v737, %v741
  %v746 = vmul.f32 %v737, %v742
  %v747 = vadd.f32 %v734, %v743
  %v748 = vadd.f32 %v734, %v744
  %v749 = vadd.f32 %v734, %v745
  %v750 = vadd.f32 %v734, %v746
  %751 = vset.pattern.permute.xlu0 1
  %752 = vperm.xlu0 %751, %v26
  %v753 = vpop.permute.xlu0 %752
  %v755 = vperm.slane %v725, 1
  %v756 = vperm.slane %v726, 1
  %v757 = vperm.slane %v727, 1
  %v758 = vperm.slane %v728, 1
  %v759 = vmul.f32 %v753, %v755
  %v760 = vmul.f32 %v753, %v756
  %v761 = vmul.f32 %v753, %v757
  %v762 = vmul.f32 %v753, %v758
  %v763 = vadd.f32 %v747, %v759
  %v764 = vadd.f32 %v748, %v760
  %v765 = vadd.f32 %v749, %v761
  %v766 = vadd.f32 %v750, %v762
  %767 = vset.pattern.permute.xlu0 2
  %768 = vperm.xlu0 %767, %v26
  %v769 = vpop.permute.xlu0 %768
  %v771 = vperm.slane %v725, 2
  %v772 = vperm.slane %v726, 2
  %v773 = vperm.slane %v727, 2
  %v774 = vperm.slane %v728, 2
  %v775 = vmul.f32 %v769, %v771
  %v776 = vmul.f32 %v769, %v772
  %v777 = vmul.f32 %v769, %v773
  %v778 = vmul.f32 %v769, %v774
  %v779 = vadd.f32 %v763, %v775
  %v780 = vadd.f32 %v764, %v776
  %v781 = vadd.f32 %v765, %v777
  %v782 = vadd.f32 %v766, %v778
  %783 = vset.pattern.permute.xlu0 3
  %784 = vperm.xlu0 %783, %v26
  %v785 = vpop.permute.xlu0 %784
  %v787 = vperm.slane %v725, 3
  %v788 = vperm.slane %v726, 3
  %v789 = vperm.slane %v727, 3
  %v790 = vperm.slane %v728, 3
  %v791 = vmul.f32 %v785, %v787
  %v792 = vmul.f32 %v785, %v788
  %v793 = vmul.f32 %v785, %v789
  %v794 = vmul.f32 %v785, %v790
  %v795 = vadd.f32 %v779, %v791
  %v796 = vadd.f32 %v780, %v792
  %v797 = vadd.f32 %v781, %v793
  %v798 = vadd.f32 %v782, %v794
  %v799 = vperm.slane %v725, 4
  %v800 = vperm.slane %v726, 4
  %v801 = vperm.slane %v727, 4
  %v802 = vperm.slane %v728, 4
  %v803 = vmul.f32 %v737, %v799
  %v804 = vmul.f32 %v737, %v800
  %v805 = vmul.f32 %v737, %v801
  %v806 = vmul.f32 %v737, %v802
  %v811 = vrot.slane %v803, 4
  %v812 = vrot.slane %v804, 4
  %v813 = vrot.slane %v805, 4
  %v814 = vrot.slane %v806, 4
  %815 = vrot.lane.b32.xlu0 %v811, 19
  %v816 = vpop.permute.xlu0 %815
  %817 = vrot.lane.b32.xlu0 %v812, 19
  %v818 = vpop.permute.xlu0 %817
  %819 = vrot.lane.b32.xlu0 %v813, 19
  %v820 = vpop.permute.xlu0 %819
  %821 = vrot.lane.b32.xlu0 %v814, 19
  %v822 = vpop.permute.xlu0 %821
  %vm823 = vcmask 154624
  %v824 = vsel %vm823, %v816, %v818
  %v825 = vsel %vm823, %v818, %v820
  %v826 = vsel %vm823, %v820, %v822
  %v830 = vadd.f32 %v734, %v824
  %v831 = vadd.f32 %v734, %v825
  %v832 = vadd.f32 %v734, %v826
  %v833 = vperm.slane %v725, 5
  %v834 = vperm.slane %v726, 5
  %v835 = vperm.slane %v727, 5
  %v836 = vperm.slane %v728, 5
  %v837 = vmul.f32 %v753, %v833
  %v838 = vmul.f32 %v753, %v834
  %v839 = vmul.f32 %v753, %v835
  %v840 = vmul.f32 %v753, %v836
  %v845 = vrot.slane %v837, 4
  %v846 = vrot.slane %v838, 4
  %v847 = vrot.slane %v839, 4
  %v848 = vrot.slane %v840, 4
  %849 = vrot.lane.b32.xlu0 %v845, 19
  %v850 = vpop.permute.xlu0 %849
  %851 = vrot.lane.b32.xlu0 %v846, 19
  %v852 = vpop.permute.xlu0 %851
  %853 = vrot.lane.b32.xlu0 %v847, 19
  %v854 = vpop.permute.xlu0 %853
  %855 = vrot.lane.b32.xlu0 %v848, 19
  %v856 = vpop.permute.xlu0 %855
  %v857 = vsel %vm823, %v850, %v852
  %v858 = vsel %vm823, %v852, %v854
  %v859 = vsel %vm823, %v854, %v856
  %v863 = vadd.f32 %v830, %v857
  %v864 = vadd.f32 %v831, %v858
  %v865 = vadd.f32 %v832, %v859
  %v866 = vperm.slane %v725, 6
  %v867 = vperm.slane %v726, 6
  %v868 = vperm.slane %v727, 6
  %v869 = vperm.slane %v728, 6
  %v870 = vmul.f32 %v769, %v866
  %v871 = vmul.f32 %v769, %v867
  %v872 = vmul.f32 %v769, %v868
  %v873 = vmul.f32 %v769, %v869
  %v878 = vrot.slane %v870, 4
  %v879 = vrot.slane %v871, 4
  %v880 = vrot.slane %v872, 4
  %v881 = vrot.slane %v873, 4
  %882 = vrot.lane.b32.xlu0 %v878, 19
  %v883 = vpop.permute.xlu0 %882
  %884 = vrot.lane.b32.xlu0 %v879, 19
  %v885 = vpop.permute.xlu0 %884
  %886 = vrot.lane.b32.xlu0 %v880, 19
  %v887 = vpop.permute.xlu0 %886
  %888 = vrot.lane.b32.xlu0 %v881, 19
  %v889 = vpop.permute.xlu0 %888
  %v890 = vsel %vm823, %v883, %v885
  %v891 = vsel %vm823, %v885, %v887
  %v892 = vsel %vm823, %v887, %v889
  %v896 = vadd.f32 %v863, %v890
  %v897 = vadd.f32 %v864, %v891
  %v898 = vadd.f32 %v865, %v892
  %v899 = vperm.slane %v725, 7
  %v900 = vperm.slane %v726, 7
  %v901 = vperm.slane %v727, 7
  %v902 = vperm.slane %v728, 7
  %v903 = vmul.f32 %v785, %v899
  %v904 = vmul.f32 %v785, %v900
  %v905 = vmul.f32 %v785, %v901
  %v906 = vmul.f32 %v785, %v902
  %v911 = vrot.slane %v903, 4
  %v912 = vrot.slane %v904, 4
  %v913 = vrot.slane %v905, 4
  %v914 = vrot.slane %v906, 4
  %915 = vrot.lane.b32.xlu0 %v911, 19
  %v916 = vpop.permute.xlu0 %915
  %917 = vrot.lane.b32.xlu0 %v912, 19
  %v918 = vpop.permute.xlu0 %917
  %919 = vrot.lane.b32.xlu0 %v913, 19
  %v920 = vpop.permute.xlu0 %919
  %921 = vrot.lane.b32.xlu0 %v914, 19
  %v922 = vpop.permute.xlu0 %921
  %v923 = vsel %vm823, %v916, %v918
  %v924 = vsel %vm823, %v918, %v920
  %v925 = vsel %vm823, %v920, %v922
  %v929 = vadd.f32 %v896, %v923
  %v930 = vadd.f32 %v897, %v924
  %v931 = vadd.f32 %v898, %v925
  %935 = vrot.lane.b32.xlu0 %v929, 109
  %v936 = vpop.permute.xlu0 %935
  %937 = vrot.lane.b32.xlu0 %v930, 109
  %v938 = vpop.permute.xlu0 %937
  %939 = vrot.lane.b32.xlu0 %v931, 109
  %v940 = vpop.permute.xlu0 %939
  %v941 = vsel %vm161, %v936, %v938
  %v942 = vsel %vm161, %v938, %v940
  %v947 = vsel %vm427, %v795, %v936
  %v948 = vsel %vm427, %v796, %v941
  %v949 = vsel %vm427, %v797, %v942
  %v950 = vsel %vm427, %v798, %v940
  %v951 = vld [vmem:[%s0] sm:$0xff]
  %v952 = vld [vmem:[%s0 + $0x8] sm:$0xff]
  %v953 = vld [vmem:[%s0 + $0x10] sm:$0xff]
  %v954 = vld [vmem:[%s0 + $0x18] sm:$0xff]
  %959 = vrot.lane.b32.xlu0 %v951, 90
  %v960 = vpop.permute.xlu0 %959
  %961 = vrot.lane.b32.xlu0 %v952, 90
  %v962 = vpop.permute.xlu0 %961
  %963 = vrot.lane.b32.xlu0 %v953, 90
  %v964 = vpop.permute.xlu0 %963
  %965 = vrot.lane.b32.xlu0 %v954, 90
  %v966 = vpop.permute.xlu0 %965
  %v967 = vsel %vm281, %v960, %v962
  %v968 = vsel %vm281, %v962, %v964
  %v969 = vsel %vm281, %v964, %v966
  %v974 = vadd.f32 %v947, %v960
  %v975 = vadd.f32 %v948, %v967
  %v976 = vadd.f32 %v949, %v968
  %v977 = vadd.f32 %v950, %v969
  %982 = vrot.lane.b32.xlu0 %v974, 19
  %v983 = vpop.permute.xlu0 %982
  %984 = vrot.lane.b32.xlu0 %v975, 19
  %v985 = vpop.permute.xlu0 %984
  %986 = vrot.lane.b32.xlu0 %v976, 19
  %v987 = vpop.permute.xlu0 %986
  %988 = vrot.lane.b32.xlu0 %v977, 19
  %v989 = vpop.permute.xlu0 %988
  %v990 = vsel %vm823, %v983, %v985
  %v991 = vsel %vm823, %v985, %v987
  %v992 = vsel %vm823, %v987, %v989
  %996 = vst [vmem:[%s6] sm:$0xff] %v990
  %997 = vst [vmem:[%s6 + $0x8] sm:$0xff] %v991
  %998 = vst [vmem:[%s6 + $0x10] sm:$0xff] %v992
  // Predicated region
  $region26: #{mobilev1_residual.1} parent=0 // pred_check
    _
  $region27: #{mobilev1_residual.1} parent=0 // pred_check_branch
    %1000 = sbr.rel (0) target = $region29
  $region28: #{mobilev1_residual.1} parent=0 // pred_region
    _
  $region29: #{mobilev1_residual.1} parent=0 // pred_fallthru
    _
  // Predicated region
  $region30: #{mobilev1_residual.1} parent=0 // pred_check
    _
  $region31: #{mobilev1_residual.1} parent=0 // pred_check_branch
    %1002 = sbr.rel (0) target = $region33
  $region32: #{mobilev1_residual.1} parent=0 // pred_region
    _
  $region33: #{mobilev1_residual.1} parent=0 // pred_fallthru
    _

</llo_original>
